<compile_context>
chip_gen: v7x
topology: tpu7x:2x2x1
jax: 0.10.0
libtpu: 0.0.40
codegen_flags: <defaults>
</compile_context>

<pallas_src>
import functools

import jax
import jax.numpy as jnp
from jax.experimental import pallas as pl
from jax.experimental.pallas import tpu as pltpu


def _round_up(n, m):
    return ((n + m - 1) // m) * m


def _mlp_kernel(in_dims, w_offsets, wlast_off, b_off, x_ref, p_ref, out_ref):
    """Fused MLP over one batch tile.

    x_ref:   (TB, input_size)   activation tile (pipelined per grid step)
    p_ref:   (R, hidden)        packed parameter slab (resident across the grid)
    out_ref: (1, TB)            lane-dense sigmoid output tile
    """
    num_hidden = len(in_dims)
    cdt = p_ref.dtype  # MXU input dtype (f32 default; bf16 opt-in on v6e/v7x)

    h = x_ref[...].astype(jnp.float32)                                  # (TB, in)
    for i in range(num_hidden):
        din = in_dims[i]
        roff = w_offsets[i]
        w = p_ref[roff:roff + din, :]                                   # (din, H)
        b = p_ref[b_off + i:b_off + i + 1, :].astype(jnp.float32)       # (1, H)
        # Linear -> ReLU.  (nn.Dropout == identity at inference.)
        h = jnp.dot(h.astype(cdt), w, preferred_element_type=jnp.float32) + b
        h = jnp.maximum(h, 0.0)                                         # ReLU (VPU, f32)

    # Final Linear(hidden, 1) + Sigmoid, emitted lane-dense as (1, TB):
    #   logits = w_last @ h^T   (contract hidden axis of both operands; wide-N MXU output)
    w_last = p_ref[wlast_off:wlast_off + 1, :]                          # (1, H)
    b_last = p_ref[b_off + num_hidden:b_off + num_hidden + 1, 0:1].astype(jnp.float32)
    logits = jax.lax.dot_general(
        w_last, h.astype(cdt),
        (((1,), (1,)), ((), ())),
        preferred_element_type=jnp.float32)                             # (1, TB)
    out_ref[...] = jax.nn.sigmoid(logits + b_last).astype(out_ref.dtype)


def pack_params(weights, biases, dtype=jnp.float32):
    """Pack every Linear weight/bias into one (R, hidden) slab (all sections 8-row aligned).

    weights: [W0 (input,H), W1 (H,H), ..., W_{L-1} (H,H), W_L (H,1)]   (x @ W layout)
    biases:  [(H,), ..., (H,), (1,)]

    Layout:
      rows [w_offsets[i], w_offsets[i]+in_dims[i])  -> hidden-layer weight i
      row   wlast_off                               -> W_L transposed to a (H,) row
      row   b_off + i                               -> bias i ;  row b_off+L, col 0 -> b_L
    Use dtype=jnp.bfloat16 on v6e/v7x to feed the bf16 MXU path (accumulation stays f32).
    """
    hidden = weights[0].shape[1]
    num_hidden = len(weights) - 1
    in_dims = tuple(int(w.shape[0]) for w in weights[:-1])

    w_offsets, r = [], 0
    for din in in_dims:
        w_offsets.append(r)
        r += _round_up(din, 8)
    wlast_off = r
    r += 8
    b_off = r
    r += _round_up(num_hidden + 1, 8)

    slab = jnp.zeros((r, hidden), jnp.float32)
    for i, din in enumerate(in_dims):
        slab = slab.at[w_offsets[i]:w_offsets[i] + din, :].set(weights[i])
    slab = slab.at[wlast_off, :].set(weights[-1][:, 0])
    for i in range(num_hidden):
        slab = slab.at[b_off + i, :].set(biases[i].reshape(-1))
    slab = slab.at[b_off + num_hidden, 0].set(biases[-1][0])
    return slab.astype(dtype), in_dims, tuple(w_offsets), wlast_off, b_off


def baseline_net_forward(x, slab, in_dims, w_offsets, wlast_off, b_off, *, block_b=512):
    """Run the fused BaselineNet forward.

    Args:
      x:    (B, input_size) activations.
      slab: (R, hidden) packed parameter slab from pack_params().
      in_dims / w_offsets / wlast_off / b_off: static layout metadata from pack_params().
      block_b: batch-tile upper bound (multiple of 128).
    Returns:
      (B,) float32 sigmoid outputs (trailing dim squeezed).
    """
    B, input_size = x.shape
    R, H = slab.shape
    assert in_dims[0] == input_size
    assert block_b % 128 == 0

    # Batch tile: full batch if it fits one tile (full-dim blocks are always legal),
    # otherwise a 128-aligned tile with the last block masked by Pallas.
    tb = B if B <= block_b else block_b
    grid = (pl.cdiv(B, tb),)

    kernel = functools.partial(
        _mlp_kernel, tuple(in_dims), tuple(w_offsets), wlast_off, b_off)

    itemsize = jnp.dtype(slab.dtype).itemsize
    flops = 2 * B * (sum(d * H for d in in_dims) + H)
    bytes_accessed = B * input_size * itemsize + slab.size * itemsize + B * 4

    out = pl.pallas_call(
        kernel,
        out_shape=jax.ShapeDtypeStruct((1, B), jnp.float32),
        grid=grid,
        in_specs=[
            # Batch-tiled activations: double-buffered by the BlockSpec pipeline.
            pl.BlockSpec((tb, input_size), lambda i: (i, 0)),
            # Single packed parameter slab, resident in VMEM across all batch tiles.
            pl.BlockSpec((R, H), lambda i: (0, 0)),
        ],
        # Lane-dense output: B on the lane axis instead of a masked (B, 1) store.
        out_specs=pl.BlockSpec((1, tb), lambda i: (0, i)),
        compiler_params=pltpu.CompilerParams(
            # Independent batch tiles -> shard grid steps across both v7x TensorCores.
            dimension_semantics=("parallel",),
            # NOTE: if tb * input_size grows large, budget VMEM explicitly via
            # vmem_limit_bytes (v7x: 64 MiB physical / 32 MiB default scoped,
            # each pipelined operand is double-buffered).
        ),
        cost_estimate=pl.CostEstimate(
            flops=flops, transcendentals=B, bytes_accessed=bytes_accessed),
    )(x.astype(slab.dtype), slab)
    return out[0, :]  # squeeze(1)


def init_params(key, input_size, hidden_size, num_layers):
    """Deterministic init mimicking the nn.Linear shapes in BaselineNet.__init__."""
    dims = [input_size] + [hidden_size] * num_layers + [1]
    weights, biases = [], []
    for i in range(len(dims) - 1):
        key, kw, kb = jax.random.split(key, 3)
        fan_in, fan_out = dims[i], dims[i + 1]
        bound = 1.0 / float(fan_in) ** 0.5
        # PyTorch Linear weight is (out, in); store transposed (in, out) for x @ W.
        w = jax.random.uniform(kw, (fan_in, fan_out), jnp.float32, -bound, bound)
        b = jax.random.uniform(kb, (fan_out,), jnp.float32, -bound, bound)
        weights.append(w)
        biases.append(b)
    return weights, biases


if __name__ == "__main__":
    # Small, module-consistent shapes (batch chosen to exercise the 2-step batch grid).
    batch = 256
    input_size = 32
    hidden_size = 32
    num_layers = 2
    dropout = 0.1  # identity at inference

    key = jax.random.PRNGKey(0)
    key, kx = jax.random.split(key)
    x = jax.random.normal(kx, (batch, input_size), dtype=jnp.float32)

    weights, biases = init_params(key, input_size, hidden_size, num_layers)
    slab, in_dims, w_offs, wlast_off, b_off = pack_params(weights, biases)  # f32 path

    y = baseline_net_forward(x, slab, in_dims, w_offs, wlast_off, b_off, block_b=128)
    y = jax.block_until_ready(y)

    # Pure-JAX reference of the same forward pass.
    h = x
    for i in range(num_layers):
        h = jnp.maximum(h @ weights[i] + biases[i], 0.0)
    ref = jax.nn.sigmoid(h @ weights[-1] + biases[-1])[:, 0]

    assert y.shape == (batch,)
    assert jnp.allclose(y, ref, atol=1e-5, rtol=1e-5), "mismatch vs reference"

    print("KERNEL_OK")
</pallas_src>

<mosaic_0001>
module attributes {stable_mosaic.version = 11 : i64} {
  func.func @_mlp_kernel(%arg0: i32, %arg1: memref<128x32xf32, #tpu.memory_space<vmem>>, %arg2: memref<80x32xf32, #tpu.memory_space<vmem>>, %arg3: memref<1x128xf32, #tpu.memory_space<vmem>>) attributes {dimension_semantics = [#tpu.dimension_semantics<parallel>], iteration_bounds = array<i64: 2>, scalar_prefetch = 0 : i64, scratch_operands = 0 : i64, tpu.core_type = #tpu.core_type<tc>, window_params = [{transform_indices = @transform_0, window_bounds = array<i64: 128, 32>}, {pipeline_mode = #tpu.pipeline_mode<synchronous>, transform_indices = @transform_1, window_bounds = array<i64: 80, 32>}, {transform_indices = @transform_2, window_bounds = array<i64: 1, 128>}]} {
    %c0 = arith.constant 0 : index
    %c0_0 = arith.constant 0 : index
    %0 = vector.load %arg1[%c0, %c0_0] : memref<128x32xf32, #tpu.memory_space<vmem>>, vector<128x32xf32>
    %c0_1 = arith.constant 0 : index
    %c0_2 = arith.constant 0 : index
    %1 = vector.load %arg2[%c0_1, %c0_2] : memref<80x32xf32, #tpu.memory_space<vmem>>, vector<32x32xf32>
    %c72 = arith.constant 72 : index
    %c0_3 = arith.constant 0 : index
    %2 = vector.load %arg2[%c72, %c0_3] : memref<80x32xf32, #tpu.memory_space<vmem>>, vector<1x32xf32>
    %cst = arith.constant dense<0.000000e+00> : vector<128x32xf32>
    %3 = tpu.matmul %0, %1, %cst {dimension_numbers = #tpu.dot_dimension_numbers<[1], [0], [0], [1], [0, 0, 1, 1], [], []>} : vector<128x32xf32>, vector<32x32xf32>, vector<128x32xf32> -> vector<128x32xf32>
    %4 = vector.broadcast %2 : vector<1x32xf32> to vector<128x32xf32>
    %5 = arith.addf %3, %4 : vector<128x32xf32>
    %cst_4 = arith.constant 0.000000e+00 : f32
    %6 = vector.broadcast %cst_4 : f32 to vector<128x32xf32>
    %7 = arith.maximumf %5, %6 : vector<128x32xf32>
    %c32 = arith.constant 32 : index
    %c0_5 = arith.constant 0 : index
    %8 = vector.load %arg2[%c32, %c0_5] : memref<80x32xf32, #tpu.memory_space<vmem>>, vector<32x32xf32>
    %c73 = arith.constant 73 : index
    %c0_6 = arith.constant 0 : index
    %9 = vector.load %arg2[%c73, %c0_6] : memref<80x32xf32, #tpu.memory_space<vmem>>, vector<1x32xf32>
    %cst_7 = arith.constant dense<0.000000e+00> : vector<128x32xf32>
    %10 = tpu.matmul %7, %8, %cst_7 {dimension_numbers = #tpu.dot_dimension_numbers<[1], [0], [0], [1], [0, 0, 1, 1], [], []>} : vector<128x32xf32>, vector<32x32xf32>, vector<128x32xf32> -> vector<128x32xf32>
    %11 = vector.broadcast %9 : vector<1x32xf32> to vector<128x32xf32>
    %12 = arith.addf %10, %11 : vector<128x32xf32>
    %cst_8 = arith.constant 0.000000e+00 : f32
    %13 = vector.broadcast %cst_8 : f32 to vector<128x32xf32>
    %14 = arith.maximumf %12, %13 : vector<128x32xf32>
    %c64 = arith.constant 64 : index
    %c0_9 = arith.constant 0 : index
    %15 = vector.load %arg2[%c64, %c0_9] : memref<80x32xf32, #tpu.memory_space<vmem>>, vector<1x32xf32>
    %c74 = arith.constant 74 : index
    %c0_10 = arith.constant 0 : index
    %16 = vector.load %arg2[%c74, %c0_10] : memref<80x32xf32, #tpu.memory_space<vmem>>, vector<1x1xf32>
    %cst_11 = arith.constant dense<0.000000e+00> : vector<1x128xf32>
    %17 = tpu.matmul %15, %14, %cst_11 {dimension_numbers = #tpu.dot_dimension_numbers<[1], [1], [0], [0], [0, 0, 1, 0], [], []>} : vector<1x32xf32>, vector<128x32xf32>, vector<1x128xf32> -> vector<1x128xf32>
    %18 = vector.broadcast %16 : vector<1x1xf32> to vector<1x128xf32>
    %19 = arith.addf %17, %18 : vector<1x128xf32>
    %20 = arith.negf %19 : vector<1x128xf32>
    %21 = math.exp %20 : vector<1x128xf32>
    %cst_12 = arith.constant 1.000000e+00 : f32
    %22 = vector.broadcast %cst_12 : f32 to vector<1x128xf32>
    %23 = arith.addf %22, %21 : vector<1x128xf32>
    %24 = arith.divf %22, %23 : vector<1x128xf32>
    %c0_13 = arith.constant 0 : index
    %c0_14 = arith.constant 0 : index
    %25 = vector.load %arg3[%c0_13, %c0_14] : memref<1x128xf32, #tpu.memory_space<vmem>>, vector<1x128xf32>
    tpu.vector_store %arg3[%c0_13, %c0_14], %24 {strides = array<i32>} : memref<1x128xf32, #tpu.memory_space<vmem>>, vector<1x128xf32>,
    return
  }
  func.func @transform_0(%arg0: i32) -> (i32, i32) {
    %c0_i32 = arith.constant 0 : i32
    %c0_i32_0 = arith.constant 0 : i32
    return %arg0, %c0_i32 : i32, i32
  }
  func.func @transform_1(%arg0: i32) -> (i32, i32) {
    %c0_i32 = arith.constant 0 : i32
    %c0_i32_0 = arith.constant 0 : i32
    %c0_i32_1 = arith.constant 0 : i32
    return %c0_i32, %c0_i32_0 : i32, i32
  }
  func.func @transform_2(%arg0: i32) -> (i32, i32) {
    %c0_i32 = arith.constant 0 : i32
    %c0_i32_0 = arith.constant 0 : i32
    return %c0_i32, %arg0 : i32, i32
  }
}

</mosaic_0001>

<llo_original>
// kernel: tpu_custom_call.1
$region0: #{tpu_custom_call.1}
  #allocation0 [shape = 'u32[]', space=smem, size = 0x4, offset = 0x4, fixed_abs, tag = 'smem constant byte address 0x4 - core index']
  #allocation1 [shape = 'u32[144,128]{1,0:T(1,128)}', space=vmem, size = 0x12000, scoped, tag = 'internal scratch']
  %s0 = inlined_call_operand.vmem [shape: f32[256,32], index: 0, kind: input, shape index: {}]
  %s1 = inlined_call_operand.vmem [shape: f32[80,32], index: 1, kind: input, shape index: {}]
  %s2 = inlined_call_operand.hbm [shape: f32[1,256], index: 2, kind: output, shape index: {}]
  %s3 = sld [smem:[#allocation0]]
  $region41: #{tpu_custom_call.1} parent=0
    _
  %s5 = ssub.s32 1, %s3
  %s6 = scalar_select 0, %s5, %s3
  $region1: #{tpu_custom_call.1} parent=0
    #allocation2 [shape = 'u8[1024]{0}', space=vmem, size = 0x400, scoped, tag = 'output window, operand 0']
    #allocation3 [shape = 's32[2]{0}', space=sflag, size = 0x8, scoped, tag = 'scoped memory for tpu_custom_call.1']
    %7 = vsyncpa [#allocation3], 0
    %s8 = scalar_lea.sflag [#allocation3], 1
    %9 = vsyncpa %s8, 0
    loop: start=0, step=1, limit=4
    $region2: #{tpu_custom_call.1} parent=1 // loop_pre_header
      _
    $region3: #{tpu_custom_call.1} parent=1 // loop_header
      %s11 = sphi 0, %s15
      %p12 = scmp.ge.s32.totalorder %s11, 4
      %s21 = sphi 0, %s23
      %s24 = sphi 0, %s21
      %s25 = sphi 0, %s24
      %s41 = sphi 0, %s25
      %s45 = sphi 0, %s45
      %s47 = sphi 0, %s45
      %s48 = sphi 0, %s47
      %s62 = sphi 0, %s48
      %s68 = sphi 0, %s70
      %s71 = sphi 0, %s68
      %s72 = sphi 0, %s71
      %s88 = sphi 0, %s72
    $region4: #{tpu_custom_call.1} parent=1 // loop_header_branch
      %14 = sbr.rel (%p12) target = $region8
    $region5: #{tpu_custom_call.1} parent=1 // loop_body
      %s16 = ssub.s32 %s11, 1
      %s17 = ssub.s32 %s11, 2
      %s18 = sadd.s32 %s11, 1
      %s19 = ssub.s32 %s11, %s18
      %p20 = scmp.eq.s32.totalorder %s19, 0
      %s22 = sadd.s32 %s21, 1
      %s23 = scalar_select %p20, %s21, %s22
      %p26 = pneg %p20
      %p27 = scmp.eq.s32.totalorder %s11, 1
      %p28 = por %p26, %p27
      %p29 = scmp.ne.s32.totalorder %s21, %s24
      %p30 = scmp.eq.s32.totalorder %s11, 0
      %p31 = por %p29, %p30
      %p32 = scmp.ne.s32.totalorder %s21, %s24
      %p33 = scmp.eq.s32.totalorder %s16, 1
      %p34 = por %p32, %p33
      %p35 = scmp.ne.s32.totalorder %s24, %s25
      %p36 = scmp.eq.s32.totalorder %s16, 0
      %p37 = por %p35, %p36
      %p38 = scmp.ne.s32.totalorder %s24, %s25
      %p39 = scmp.eq.s32.totalorder %s17, 1
      %p40 = por %p38, %p39
      %p42 = scmp.ne.s32.totalorder %s25, %s41
      %p43 = scmp.eq.s32.totalorder %s17, 0
      %p44 = por %p42, %p43
      %s46 = sadd.s32 %s45, 1
      %p49 = scmp.eq.s32.totalorder %s11, 1
      %p50 = scmp.ne.s32.totalorder %s45, %s47
      %p51 = scmp.eq.s32.totalorder %s11, 0
      %p52 = por %p50, %p51
      %p53 = scmp.ne.s32.totalorder %s45, %s47
      %p54 = scmp.eq.s32.totalorder %s16, 1
      %p55 = por %p53, %p54
      %p56 = scmp.ne.s32.totalorder %s47, %s48
      %p57 = scmp.eq.s32.totalorder %s16, 0
      %p58 = por %p56, %p57
      %p59 = scmp.ne.s32.totalorder %s47, %s48
      %p60 = scmp.eq.s32.totalorder %s17, 1
      %p61 = por %p59, %p60
      %p63 = scmp.ne.s32.totalorder %s48, %s62
      %p64 = scmp.eq.s32.totalorder %s17, 0
      %p65 = por %p63, %p64
      %s66 = ssub.s32 %s11, %s18
      %p67 = scmp.eq.s32.totalorder %s66, 0
      %s69 = sadd.s32 %s68, 1
      %s70 = scalar_select %p67, %s68, %s69
      %p73 = pneg %p67
      %p74 = scmp.eq.s32.totalorder %s11, 1
      %p75 = por %p73, %p74
      %p76 = scmp.ne.s32.totalorder %s68, %s71
      %p77 = scmp.eq.s32.totalorder %s11, 0
      %p78 = por %p76, %p77
      %p79 = scmp.ne.s32.totalorder %s68, %s71
      %p80 = scmp.eq.s32.totalorder %s16, 1
      %p81 = por %p79, %p80
      %p82 = scmp.ne.s32.totalorder %s71, %s72
      %p83 = scmp.eq.s32.totalorder %s16, 0
      %p84 = por %p82, %p83
      %p85 = scmp.ne.s32.totalorder %s71, %s72
      %p86 = scmp.eq.s32.totalorder %s17, 1
      %p87 = por %p85, %p86
      %p89 = scmp.ne.s32.totalorder %s72, %s88
      %p90 = scmp.eq.s32.totalorder %s17, 0
      %p91 = por %p89, %p90
      %p92 = scmp.le.s32.totalorder 1, %s11
      %p93 = scmp.lt.s32.totalorder %s11, 3
      %p94 = pnand %p92, %p93
      %p95 = pneg %p94
      // Predicated region
      $region9: #{tpu_custom_call.1} parent=5 // pred_check
        _
      $region10: #{tpu_custom_call.1} parent=5 // pred_check_branch
        %97 = sbr.rel (%p94) target = $region12
      $region11: #{tpu_custom_call.1} parent=5 // pred_region
        %s98 = ssub.s32 %s11, 1
        // Predicated region
        $region13: #{tpu_custom_call.1} parent=11 // pred_check
          %p99 = pneg %p58
        $region14: #{tpu_custom_call.1} parent=11 // pred_check_branch
          %101 = sbr.rel (%p99) target = $region16
        $region15: #{tpu_custom_call.1} parent=11 // pred_region
          _
        $region16: #{tpu_custom_call.1} parent=11 // pred_fallthru
          _
      $region12: #{tpu_custom_call.1} parent=5 // pred_fallthru
        _
      %p102 = scmp.lt.s32.totalorder %s11, 2
      // Predicated region
      $region17: #{tpu_custom_call.1} parent=5 // pred_check
        %p103 = pneg %p102
      $region18: #{tpu_custom_call.1} parent=5 // pred_check_branch
        %105 = sbr.rel (%p103) target = $region20
      $region19: #{tpu_custom_call.1} parent=5 // pred_region
        // Predicated region
        $region21: #{tpu_custom_call.1} parent=19 // pred_check
          %p106 = pneg %p31
        $region22: #{tpu_custom_call.1} parent=19 // pred_check_branch
          %108 = sbr.rel (%p106) target = $region24
        $region23: #{tpu_custom_call.1} parent=19 // pred_region
          %s109 = smul.u32 16, %s11
          %p110 = scmp.lt.s32.totalorder %s109, 31
          %s111 = scalar_select %p110, %s109, 31
          %s112 = smul.addr %s111, 8
          %s113 = scalar_lea.vmem %s0, %s112
          %s114 = smul.u32 16, %s11
        $region24: #{tpu_custom_call.1} parent=19 // pred_fallthru
          _
      $region20: #{tpu_custom_call.1} parent=5 // pred_fallthru
        _
      %p115 = scmp.le.s32.totalorder 1, %s11
      %p116 = scmp.lt.s32.totalorder %s11, 3
      %p117 = pnand %p115, %p116
      %p118 = pneg %p117
      // Predicated region
      $region25: #{tpu_custom_call.1} parent=5 // pred_check
        _
      $region26: #{tpu_custom_call.1} parent=5 // pred_check_branch
        %120 = sbr.rel (%p117) target = $region28
      $region27: #{tpu_custom_call.1} parent=5 // pred_region
        %s121 = ssub.s32 %s11, 1
        %s122 = smul.u32 16, %s16
        %p123 = scmp.lt.s32.totalorder %s122, 31
        %s124 = scalar_select %p123, %s122, 31
        %s125 = smul.addr %s124, 8
        %s126 = scalar_lea.vmem %s0, %s125
        %p127 = pneg %p37
        %p128 = pneg %p34
        %p129 = pneg %p58
        %p130 = pneg %p55
        %p131 = pneg %p84
        %p132 = pneg %p81
        %s133 = sand.u32 %s71, 1
        %s134 = scalar_lea.sflag [#allocation3], %s133
        %s135 = sand.u32 %s71, 1
        %s136 = scalar_lea.vmem [#allocation2], %s135
        %s137 = smul.u32 16, %s16
        %p138 = scmp.lt.s32.totalorder %s137, 31
        %s139 = scalar_select %p138, %s137, 31
        %s140 = smul.addr %s139, 8
        %s141 = scalar_lea.vmem %s0, %s140
        %s142 = smul.u32 16, %s16
        %v143 = vld [vmem:[%s141] sm:$0xff]
        %v144 = vld [vmem:[%s141 + $0x8] sm:$0xff]
        %v145 = vld [vmem:[%s141 + $0x10] sm:$0xff]
        %v146 = vld [vmem:[%s141 + $0x18] sm:$0xff]
        %v147 = vld [vmem:[%s141 + $0x20] sm:$0xff]
        %v148 = vld [vmem:[%s141 + $0x28] sm:$0xff]
        %v149 = vld [vmem:[%s141 + $0x30] sm:$0xff]
        %v150 = vld [vmem:[%s141 + $0x38] sm:$0xff]
        %v151 = vld [vmem:[%s141 + $0x40] sm:$0xff]
        %v152 = vld [vmem:[%s141 + $0x48] sm:$0xff]
        %v153 = vld [vmem:[%s141 + $0x50] sm:$0xff]
        %v154 = vld [vmem:[%s141 + $0x58] sm:$0xff]
        %v155 = vld [vmem:[%s141 + $0x60] sm:$0xff]
        %v156 = vld [vmem:[%s141 + $0x68] sm:$0xff]
        %v157 = vld [vmem:[%s141 + $0x70] sm:$0xff]
        %v158 = vld [vmem:[%s141 + $0x78] sm:$0xff]
        %v159 = vld [vmem:[%s1] sm:$0xff]
        %v160 = vld [vmem:[%s1 + $0x8] sm:$0xff]
        %v161 = vld [vmem:[%s1 + $0x10] sm:$0xff]
        %v162 = vld [vmem:[%s1 + $0x18] sm:$0xff]
        %v163 = vld [vmem:[%s1 + $0x48] sm:$0x1]
        %v164 = vlaneseq
        %v165 = vshrl.u32 %v164, 7
        %v166 = vsub.s32 0, %v165
        %v167 = vrot.slane %v163, %v166
        %vm168 = vcmask 261120
        %v170 = vsel %vm168, %v143, 0
        %v173 = vsel %vm168, %v144, 0
        %v176 = vsel %vm168, %v145, 0
        %v179 = vsel %vm168, %v146, 0
        %v182 = vsel %vm168, %v147, 0
        %v185 = vsel %vm168, %v148, 0
        %v188 = vsel %vm168, %v149, 0
        %v191 = vsel %vm168, %v150, 0
        %v194 = vsel %vm168, %v151, 0
        %v197 = vsel %vm168, %v152, 0
        %v200 = vsel %vm168, %v153, 0
        %v203 = vsel %vm168, %v154, 0
        %v206 = vsel %vm168, %v155, 0
        %v209 = vsel %vm168, %v156, 0
        %v212 = vsel %vm168, %v157, 0
        %v215 = vsel %vm168, %v158, 0
        %217 = vmatprep.subr.mxu0 0.0
        %218 = vmatpush1.msra.mxu0 %v159
        %219 = vmatprep.subr.mxu0 0.0
        %220 = vmatpush1.msra.mxu0 %v160
        %221 = vmatprep.subr.mxu0 0.0
        %222 = vmatpush1.msra.mxu0 %v161
        %223 = vmatprep.subr.mxu0 0.0
        %224 = vmatpush1.msra.mxu0 %v162
        %225 = vmatprep.subr.mxu0 0.0
        %226 = vmatpush1.msra.mxu0 0.0
        %227 = vmatprep.subr.mxu0 0.0
        %228 = vmatpush1.msra.mxu0 0.0
        %229 = vmatprep.subr.mxu0 0.0
        %230 = vmatpush1.msra.mxu0 0.0
        %231 = vmatprep.subr.mxu0 0.0
        %232 = vmatpush1.msra.mxu0 0.0
        %233 = vmatprep.subr.mxu0 0.0
        %234 = vmatpush1.msra.mxu0 0.0
        %235 = vmatprep.subr.mxu0 0.0
        %236 = vmatpush1.msra.mxu0 0.0
        %237 = vmatprep.subr.mxu0 0.0
        %238 = vmatpush1.msra.mxu0 0.0
        %239 = vmatprep.subr.mxu0 0.0
        %240 = vmatpush1.msra.mxu0 0.0
        %241 = vmatprep.subr.mxu0 0.0
        %242 = vmatpush1.msra.mxu0 0.0
        %243 = vmatprep.subr.mxu0 0.0
        %244 = vmatpush1.msra.mxu0 0.0
        %245 = vmatprep.subr.mxu0 0.0
        %246 = vmatpush1.msra.mxu0 0.0
        %247 = vmatprep.subr.mxu0 0.0
        %248 = vmatpush1.msra.mxu0 0.0
        %249 = vmatprep.subr.mxu0 0.0
        %250 = vmatpush1.msra.mxu0 0.0
        %251 = vmatprep.subr.mxu0 0.0
        %252 = vmatpush1.msra.mxu0 0.0
        %253 = vmatprep.subr.mxu0 0.0
        %254 = vmatpush1.msra.mxu0 0.0
        %255 = vmatprep.subr.mxu0 0.0
        %256 = vmatpush1.msra.mxu0 0.0
        %257 = vmatprep.subr.mxu0 0.0
        %258 = vmatpush1.msra.mxu0 0.0
        %259 = vmatprep.subr.mxu0 0.0
        %260 = vmatpush1.msra.mxu0 0.0
        %261 = vmatprep.subr.mxu0 0.0
        %262 = vmatpush1.msra.mxu0 0.0
        %263 = vmatprep.subr.mxu0 0.0
        %264 = vmatpush1.msra.mxu0 0.0
        %265 = vmatprep.subr.mxu0 0.0
        %266 = vmatpush1.msra.mxu0 0.0
        %267 = vmatprep.subr.mxu0 0.0
        %268 = vmatpush1.msra.mxu0 0.0
        %269 = vmatprep.subr.mxu0 0.0
        %270 = vmatpush1.msra.mxu0 0.0
        %271 = vmatprep.subr.mxu0 0.0
        %272 = vmatpush1.msra.mxu0 0.0
        %273 = vmatprep.subr.mxu0 0.0
        %274 = vmatpush1.msra.mxu0 0.0
        %275 = vmatprep.subr.mxu0 0.0
        %276 = vmatpush1.msra.mxu0 0.0
        %277 = vmatprep.subr.mxu0 0.0
        %278 = vmatpush1.msra.mxu0 0.0
        %279 = vmatprep.subr.mxu0 0.0
        %280 = vmatpush1.msra.mxu0 0.0
        %281 = vmatprep.mubr.f32.mxu0 0.0
        %282 = vmatmul.mubr.f32.gmra.mrb[0].mxu0 %v170
        %v283 = vpop.f32.mrb[0].mxu0
        %v284 = vadd.f32 %v167, %v283
        %v285 = vpop.f32.mrb[0].mxu0
        %286 = vmatprep.mubr.f32.mxu0 0.0
        %287 = vmatmul.mubr.f32.gmra.mrb[0].mxu0 %v173
        %v288 = vpop.f32.mrb[0].mxu0
        %v289 = vadd.f32 %v167, %v288
        %v290 = vpop.f32.mrb[0].mxu0
        %291 = vmatprep.mubr.f32.mxu0 0.0
        %292 = vmatmul.mubr.f32.gmra.mrb[0].mxu0 %v176
        %v293 = vpop.f32.mrb[0].mxu0
        %v294 = vadd.f32 %v167, %v293
        %v295 = vpop.f32.mrb[0].mxu0
        %296 = vmatprep.mubr.f32.mxu0 0.0
        %297 = vmatmul.mubr.f32.gmra.mrb[0].mxu0 %v179
        %v298 = vpop.f32.mrb[0].mxu0
        %v299 = vadd.f32 %v167, %v298
        %v300 = vpop.f32.mrb[0].mxu0
        %301 = vmatprep.mubr.f32.mxu0 0.0
        %302 = vmatmul.mubr.f32.gmra.mrb[0].mxu0 %v182
        %v303 = vpop.f32.mrb[0].mxu0
        %v304 = vadd.f32 %v167, %v303
        %v305 = vpop.f32.mrb[0].mxu0
        %306 = vmatprep.mubr.f32.mxu0 0.0
        %307 = vmatmul.mubr.f32.gmra.mrb[0].mxu0 %v185
        %v308 = vpop.f32.mrb[0].mxu0
        %v309 = vadd.f32 %v167, %v308
        %v310 = vpop.f32.mrb[0].mxu0
        %311 = vmatprep.mubr.f32.mxu0 0.0
        %312 = vmatmul.mubr.f32.gmra.mrb[0].mxu0 %v188
        %v313 = vpop.f32.mrb[0].mxu0
        %v314 = vadd.f32 %v167, %v313
        %v315 = vpop.f32.mrb[0].mxu0
        %316 = vmatprep.mubr.f32.mxu0 0.0
        %317 = vmatmul.mubr.f32.gmra.mrb[0].mxu0 %v191
        %v318 = vpop.f32.mrb[0].mxu0
        %v319 = vadd.f32 %v167, %v318
        %v320 = vpop.f32.mrb[0].mxu0
        %321 = vmatprep.mubr.f32.mxu0 0.0
        %322 = vmatmul.mubr.f32.gmra.mrb[0].mxu0 %v194
        %v323 = vpop.f32.mrb[0].mxu0
        %v324 = vadd.f32 %v167, %v323
        %v325 = vpop.f32.mrb[0].mxu0
        %326 = vmatprep.mubr.f32.mxu0 0.0
        %327 = vmatmul.mubr.f32.gmra.mrb[0].mxu0 %v197
        %v328 = vpop.f32.mrb[0].mxu0
        %v329 = vadd.f32 %v167, %v328
        %v330 = vpop.f32.mrb[0].mxu0
        %331 = vmatprep.mubr.f32.mxu0 0.0
        %332 = vmatmul.mubr.f32.gmra.mrb[0].mxu0 %v200
        %v333 = vpop.f32.mrb[0].mxu0
        %v334 = vadd.f32 %v167, %v333
        %v335 = vpop.f32.mrb[0].mxu0
        %336 = vmatprep.mubr.f32.mxu0 0.0
        %337 = vmatmul.mubr.f32.gmra.mrb[0].mxu0 %v203
        %v338 = vpop.f32.mrb[0].mxu0
        %v339 = vadd.f32 %v167, %v338
        %v340 = vpop.f32.mrb[0].mxu0
        %341 = vmatprep.mubr.f32.mxu0 0.0
        %342 = vmatmul.mubr.f32.gmra.mrb[0].mxu0 %v206
        %v343 = vpop.f32.mrb[0].mxu0
        %v344 = vadd.f32 %v167, %v343
        %v345 = vpop.f32.mrb[0].mxu0
        %346 = vmatprep.mubr.f32.mxu0 0.0
        %347 = vmatmul.mubr.f32.gmra.mrb[0].mxu0 %v209
        %v348 = vpop.f32.mrb[0].mxu0
        %v349 = vadd.f32 %v167, %v348
        %v350 = vpop.f32.mrb[0].mxu0
        %351 = vmatprep.mubr.f32.mxu0 0.0
        %352 = vmatmul.mubr.f32.gmra.mrb[0].mxu0 %v212
        %v353 = vpop.f32.mrb[0].mxu0
        %v354 = vadd.f32 %v167, %v353
        %v355 = vpop.f32.mrb[0].mxu0
        %356 = vmatprep.mubr.f32.mxu0 0.0
        %357 = vmatmul.mubr.f32.gmra.mrb[0].mxu0 %v215
        %v358 = vpop.f32.mrb[0].mxu0
        %v359 = vadd.f32 %v167, %v358
        %v360 = vpop.f32.mrb[0].mxu0
        %361 = vdwg.mxu0
        %v362 = vmax.f32 %v284, 0.0
        %v363 = vmax.f32 %v289, 0.0
        %v364 = vmax.f32 %v294, 0.0
        %v365 = vmax.f32 %v299, 0.0
        %v366 = vmax.f32 %v304, 0.0
        %v367 = vmax.f32 %v309, 0.0
        %v368 = vmax.f32 %v314, 0.0
        %v369 = vmax.f32 %v319, 0.0
        %v370 = vmax.f32 %v324, 0.0
        %v371 = vmax.f32 %v329, 0.0
        %v372 = vmax.f32 %v334, 0.0
        %v373 = vmax.f32 %v339, 0.0
        %v374 = vmax.f32 %v344, 0.0
        %v375 = vmax.f32 %v349, 0.0
        %v376 = vmax.f32 %v354, 0.0
        %v377 = vmax.f32 %v359, 0.0
        %v378 = vld [vmem:[%s1 + $0x20] sm:$0xff]
        %v379 = vld [vmem:[%s1 + $0x28] sm:$0xff]
        %v380 = vld [vmem:[%s1 + $0x30] sm:$0xff]
        %v381 = vld [vmem:[%s1 + $0x38] sm:$0xff]
        %v382 = vld [vmem:[%s1 + $0x49] sm:$0x1]
        %v383 = vlaneseq
        %v384 = vshrl.u32 %v383, 7
        %v385 = vsub.s32 0, %v384
        %v386 = vrot.slane %v382, %v385
        %v388 = vsel %vm168, %v362, 0
        %v391 = vsel %vm168, %v363, 0
        %v394 = vsel %vm168, %v364, 0
        %v397 = vsel %vm168, %v365, 0
        %v400 = vsel %vm168, %v366, 0
        %v403 = vsel %vm168, %v367, 0
        %v406 = vsel %vm168, %v368, 0
        %v409 = vsel %vm168, %v369, 0
        %v412 = vsel %vm168, %v370, 0
        %v415 = vsel %vm168, %v371, 0
        %v418 = vsel %vm168, %v372, 0
        %v421 = vsel %vm168, %v373, 0
        %v424 = vsel %vm168, %v374, 0
        %v427 = vsel %vm168, %v375, 0
        %v430 = vsel %vm168, %v376, 0
        %v433 = vsel %vm168, %v377, 0
        %435 = vmatprep.subr.mxu0 0.0
        %436 = vmatpush1.msra.mxu0 %v378
        %437 = vmatprep.subr.mxu0 0.0
        %438 = vmatpush1.msra.mxu0 %v379
        %439 = vmatprep.subr.mxu0 0.0
        %440 = vmatpush1.msra.mxu0 %v380
        %441 = vmatprep.subr.mxu0 0.0
        %442 = vmatpush1.msra.mxu0 %v381
        %443 = vmatprep.subr.mxu0 0.0
        %444 = vmatpush1.msra.mxu0 0.0
        %445 = vmatprep.subr.mxu0 0.0
        %446 = vmatpush1.msra.mxu0 0.0
        %447 = vmatprep.subr.mxu0 0.0
        %448 = vmatpush1.msra.mxu0 0.0
        %449 = vmatprep.subr.mxu0 0.0
        %450 = vmatpush1.msra.mxu0 0.0
        %451 = vmatprep.subr.mxu0 0.0
        %452 = vmatpush1.msra.mxu0 0.0
        %453 = vmatprep.subr.mxu0 0.0
        %454 = vmatpush1.msra.mxu0 0.0
        %455 = vmatprep.subr.mxu0 0.0
        %456 = vmatpush1.msra.mxu0 0.0
        %457 = vmatprep.subr.mxu0 0.0
        %458 = vmatpush1.msra.mxu0 0.0
        %459 = vmatprep.subr.mxu0 0.0
        %460 = vmatpush1.msra.mxu0 0.0
        %461 = vmatprep.subr.mxu0 0.0
        %462 = vmatpush1.msra.mxu0 0.0
        %463 = vmatprep.subr.mxu0 0.0
        %464 = vmatpush1.msra.mxu0 0.0
        %465 = vmatprep.subr.mxu0 0.0
        %466 = vmatpush1.msra.mxu0 0.0
        %467 = vmatprep.subr.mxu0 0.0
        %468 = vmatpush1.msra.mxu0 0.0
        %469 = vmatprep.subr.mxu0 0.0
        %470 = vmatpush1.msra.mxu0 0.0
        %471 = vmatprep.subr.mxu0 0.0
        %472 = vmatpush1.msra.mxu0 0.0
        %473 = vmatprep.subr.mxu0 0.0
        %474 = vmatpush1.msra.mxu0 0.0
        %475 = vmatprep.subr.mxu0 0.0
        %476 = vmatpush1.msra.mxu0 0.0
        %477 = vmatprep.subr.mxu0 0.0
        %478 = vmatpush1.msra.mxu0 0.0
        %479 = vmatprep.subr.mxu0 0.0
        %480 = vmatpush1.msra.mxu0 0.0
        %481 = vmatprep.subr.mxu0 0.0
        %482 = vmatpush1.msra.mxu0 0.0
        %483 = vmatprep.subr.mxu0 0.0
        %484 = vmatpush1.msra.mxu0 0.0
        %485 = vmatprep.subr.mxu0 0.0
        %486 = vmatpush1.msra.mxu0 0.0
        %487 = vmatprep.subr.mxu0 0.0
        %488 = vmatpush1.msra.mxu0 0.0
        %489 = vmatprep.subr.mxu0 0.0
        %490 = vmatpush1.msra.mxu0 0.0
        %491 = vmatprep.subr.mxu0 0.0
        %492 = vmatpush1.msra.mxu0 0.0
        %493 = vmatprep.subr.mxu0 0.0
        %494 = vmatpush1.msra.mxu0 0.0
        %495 = vmatprep.subr.mxu0 0.0
        %496 = vmatpush1.msra.mxu0 0.0
        %497 = vmatprep.subr.mxu0 0.0
        %498 = vmatpush1.msra.mxu0 0.0
        %499 = vmatprep.mubr.f32.mxu0 0.0
        %500 = vmatmul.mubr.f32.gmra.mrb[0].mxu0 %v388
        %v501 = vpop.f32.mrb[0].mxu0
        %v502 = vadd.f32 %v386, %v501
        %v503 = vpop.f32.mrb[0].mxu0
        %504 = vmatprep.mubr.f32.mxu0 0.0
        %505 = vmatmul.mubr.f32.gmra.mrb[0].mxu0 %v391
        %v506 = vpop.f32.mrb[0].mxu0
        %v507 = vadd.f32 %v386, %v506
        %v508 = vpop.f32.mrb[0].mxu0
        %509 = vmatprep.mubr.f32.mxu0 0.0
        %510 = vmatmul.mubr.f32.gmra.mrb[0].mxu0 %v394
        %v511 = vpop.f32.mrb[0].mxu0
        %v512 = vadd.f32 %v386, %v511
        %v513 = vpop.f32.mrb[0].mxu0
        %514 = vmatprep.mubr.f32.mxu0 0.0
        %515 = vmatmul.mubr.f32.gmra.mrb[0].mxu0 %v397
        %v516 = vpop.f32.mrb[0].mxu0
        %v517 = vadd.f32 %v386, %v516
        %v518 = vpop.f32.mrb[0].mxu0
        %519 = vmatprep.mubr.f32.mxu0 0.0
        %520 = vmatmul.mubr.f32.gmra.mrb[0].mxu0 %v400
        %v521 = vpop.f32.mrb[0].mxu0
        %v522 = vadd.f32 %v386, %v521
        %v523 = vpop.f32.mrb[0].mxu0
        %524 = vmatprep.mubr.f32.mxu0 0.0
        %525 = vmatmul.mubr.f32.gmra.mrb[0].mxu0 %v403
        %v526 = vpop.f32.mrb[0].mxu0
        %v527 = vadd.f32 %v386, %v526
        %v528 = vpop.f32.mrb[0].mxu0
        %529 = vmatprep.mubr.f32.mxu0 0.0
        %530 = vmatmul.mubr.f32.gmra.mrb[0].mxu0 %v406
        %v531 = vpop.f32.mrb[0].mxu0
        %v532 = vadd.f32 %v386, %v531
        %v533 = vpop.f32.mrb[0].mxu0
        %534 = vmatprep.mubr.f32.mxu0 0.0
        %535 = vmatmul.mubr.f32.gmra.mrb[0].mxu0 %v409
        %v536 = vpop.f32.mrb[0].mxu0
        %v537 = vadd.f32 %v386, %v536
        %v538 = vpop.f32.mrb[0].mxu0
        %539 = vmatprep.mubr.f32.mxu0 0.0
        %540 = vmatmul.mubr.f32.gmra.mrb[0].mxu0 %v412
        %v541 = vpop.f32.mrb[0].mxu0
        %v542 = vadd.f32 %v386, %v541
        %v543 = vpop.f32.mrb[0].mxu0
        %544 = vmatprep.mubr.f32.mxu0 0.0
        %545 = vmatmul.mubr.f32.gmra.mrb[0].mxu0 %v415
        %v546 = vpop.f32.mrb[0].mxu0
        %v547 = vadd.f32 %v386, %v546
        %v548 = vpop.f32.mrb[0].mxu0
        %549 = vmatprep.mubr.f32.mxu0 0.0
        %550 = vmatmul.mubr.f32.gmra.mrb[0].mxu0 %v418
        %v551 = vpop.f32.mrb[0].mxu0
        %v552 = vadd.f32 %v386, %v551
        %v553 = vpop.f32.mrb[0].mxu0
        %554 = vmatprep.mubr.f32.mxu0 0.0
        %555 = vmatmul.mubr.f32.gmra.mrb[0].mxu0 %v421
        %v556 = vpop.f32.mrb[0].mxu0
        %v557 = vadd.f32 %v386, %v556
        %v558 = vpop.f32.mrb[0].mxu0
        %559 = vmatprep.mubr.f32.mxu0 0.0
        %560 = vmatmul.mubr.f32.gmra.mrb[0].mxu0 %v424
        %v561 = vpop.f32.mrb[0].mxu0
        %v562 = vadd.f32 %v386, %v561
        %v563 = vpop.f32.mrb[0].mxu0
        %564 = vmatprep.mubr.f32.mxu0 0.0
        %565 = vmatmul.mubr.f32.gmra.mrb[0].mxu0 %v427
        %v566 = vpop.f32.mrb[0].mxu0
        %v567 = vadd.f32 %v386, %v566
        %v568 = vpop.f32.mrb[0].mxu0
        %569 = vmatprep.mubr.f32.mxu0 0.0
        %570 = vmatmul.mubr.f32.gmra.mrb[0].mxu0 %v430
        %v571 = vpop.f32.mrb[0].mxu0
        %v572 = vadd.f32 %v386, %v571
        %v573 = vpop.f32.mrb[0].mxu0
        %574 = vmatprep.mubr.f32.mxu0 0.0
        %575 = vmatmul.mubr.f32.gmra.mrb[0].mxu0 %v433
        %v576 = vpop.f32.mrb[0].mxu0
        %v577 = vadd.f32 %v386, %v576
        %v578 = vpop.f32.mrb[0].mxu0
        %579 = vdwg.mxu0
        %v580 = vmax.f32 %v502, 0.0
        %v581 = vmax.f32 %v507, 0.0
        %v582 = vmax.f32 %v512, 0.0
        %v583 = vmax.f32 %v517, 0.0
        %v584 = vmax.f32 %v522, 0.0
        %v585 = vmax.f32 %v527, 0.0
        %v586 = vmax.f32 %v532, 0.0
        %v587 = vmax.f32 %v537, 0.0
        %v588 = vmax.f32 %v542, 0.0
        %v589 = vmax.f32 %v547, 0.0
        %v590 = vmax.f32 %v552, 0.0
        %v591 = vmax.f32 %v557, 0.0
        %v592 = vmax.f32 %v562, 0.0
        %v593 = vmax.f32 %v567, 0.0
        %v594 = vmax.f32 %v572, 0.0
        %v595 = vmax.f32 %v577, 0.0
        %v596 = vld [vmem:[%s1 + $0x40] sm:$0x1]
        %v597 = vld [vmem:[%s1 + $0x4a] sm:$0x1]
        %599 = vset.pattern.permute.xlu0 0
        %600 = vperm.xlu0 %599, %v597
        %v601 = vpop.permute.xlu0 %600
        %v604 = vsel %vm168, %v596, 0
        %v607 = vsel %vm168, %v580, 0
        %v610 = vsel %vm168, %v581, 0
        %v613 = vsel %vm168, %v582, 0
        %v616 = vsel %vm168, %v583, 0
        %v619 = vsel %vm168, %v584, 0
        %v622 = vsel %vm168, %v585, 0
        %v625 = vsel %vm168, %v586, 0
        %v628 = vsel %vm168, %v587, 0
        %v631 = vsel %vm168, %v588, 0
        %v634 = vsel %vm168, %v589, 0
        %v637 = vsel %vm168, %v590, 0
        %v640 = vsel %vm168, %v591, 0
        %v643 = vsel %vm168, %v592, 0
        %v646 = vsel %vm168, %v593, 0
        %v649 = vsel %vm168, %v594, 0
        %v652 = vsel %vm168, %v595, 0
        %654 = vmatprep.subr.mxu0 0.0
        %655 = vmatpush1.xpose.msra.mxu0 %v607
        %656 = vmatprep.subr.mxu0 0.0
        %657 = vmatpush1.xpose.msra.mxu0 %v610
        %658 = vmatprep.subr.mxu0 0.0
        %659 = vmatpush1.xpose.msra.mxu0 %v613
        %660 = vmatprep.subr.mxu0 0.0
        %661 = vmatpush1.xpose.msra.mxu0 %v616
        %662 = vmatprep.subr.mxu0 0.0
        %663 = vmatpush1.xpose.msra.mxu0 %v619
        %664 = vmatprep.subr.mxu0 0.0
        %665 = vmatpush1.xpose.msra.mxu0 %v622
        %666 = vmatprep.subr.mxu0 0.0
        %667 = vmatpush1.xpose.msra.mxu0 %v625
        %668 = vmatprep.subr.mxu0 0.0
        %669 = vmatpush1.xpose.msra.mxu0 %v628
        %670 = vmatprep.subr.mxu0 0.0
        %671 = vmatpush1.xpose.msra.mxu0 %v631
        %672 = vmatprep.subr.mxu0 0.0
        %673 = vmatpush1.xpose.msra.mxu0 %v634
        %674 = vmatprep.subr.mxu0 0.0
        %675 = vmatpush1.xpose.msra.mxu0 %v637
        %676 = vmatprep.subr.mxu0 0.0
        %677 = vmatpush1.xpose.msra.mxu0 %v640
        %678 = vmatprep.subr.mxu0 0.0
        %679 = vmatpush1.xpose.msra.mxu0 %v643
        %680 = vmatprep.subr.mxu0 0.0
        %681 = vmatpush1.xpose.msra.mxu0 %v646
        %682 = vmatprep.subr.mxu0 0.0
        %683 = vmatpush1.xpose.msra.mxu0 %v649
        %684 = vmatprep.subr.mxu0 0.0
        %685 = vmatpush1.xpose.msra.mxu0 %v652
        %686 = vmatprep.subr.mxu0 0.0
        %687 = vmatpush1.xpose.msra.mxu0 0.0
        %688 = vmatprep.subr.mxu0 0.0
        %689 = vmatpush1.xpose.msra.mxu0 0.0
        %690 = vmatprep.subr.mxu0 0.0
        %691 = vmatpush1.xpose.msra.mxu0 0.0
        %692 = vmatprep.subr.mxu0 0.0
        %693 = vmatpush1.xpose.msra.mxu0 0.0
        %694 = vmatprep.subr.mxu0 0.0
        %695 = vmatpush1.xpose.msra.mxu0 0.0
        %696 = vmatprep.subr.mxu0 0.0
        %697 = vmatpush1.xpose.msra.mxu0 0.0
        %698 = vmatprep.subr.mxu0 0.0
        %699 = vmatpush1.xpose.msra.mxu0 0.0
        %700 = vmatprep.subr.mxu0 0.0
        %701 = vmatpush1.xpose.msra.mxu0 0.0
        %702 = vmatprep.subr.mxu0 0.0
        %703 = vmatpush1.xpose.msra.mxu0 0.0
        %704 = vmatprep.subr.mxu0 0.0
        %705 = vmatpush1.xpose.msra.mxu0 0.0
        %706 = vmatprep.subr.mxu0 0.0
        %707 = vmatpush1.xpose.msra.mxu0 0.0
        %708 = vmatprep.subr.mxu0 0.0
        %709 = vmatpush1.xpose.msra.mxu0 0.0
        %710 = vmatprep.subr.mxu0 0.0
        %711 = vmatpush1.xpose.msra.mxu0 0.0
        %712 = vmatprep.subr.mxu0 0.0
        %713 = vmatpush1.xpose.msra.mxu0 0.0
        %714 = vmatprep.subr.mxu0 0.0
        %715 = vmatpush1.xpose.msra.mxu0 0.0
        %716 = vmatprep.subr.mxu0 0.0
        %717 = vmatpush1.xpose.msra.mxu0 0.0
        %718 = vmatprep.mubr.f32.mxu0 0.0
        %719 = vmatmul.mubr.f32.gmra.mrb[0].mxu0 %v604
        %v720 = vpop.f32.mrb[0].mxu0
        %v721 = vadd.f32 %v601, %v720
        %v722 = vpop.f32.mrb[0].mxu0
        %723 = vdwg.mxu0
        %v724 = vxor.u32 %v721, 2147483648
        %v725 = vmul.f32 %v724, 1.442695
        %v726 = vpow.pop %v725
        %v727 = vadd.f32 %v726, 1.0
        %v728 = vrcp.pop %v727
        %v729 = vmul.f32 1.0, %v728
        %730 = vst [vmem:[%s136] sm:$0x1] %v729
        %s731 = sand.u32 %s71, 1
        %s732 = scalar_lea.sflag [#allocation3], %s731
        %s733 = sand.u32 %s71, 1
        %s734 = scalar_lea.vmem [#allocation2], %s733
        // Predicated region
        $region29: #{tpu_custom_call.1} parent=27 // pred_check
          %p735 = pneg %p81
        $region30: #{tpu_custom_call.1} parent=27 // pred_check_branch
          %737 = sbr.rel (%p735) target = $region32
        $region31: #{tpu_custom_call.1} parent=27 // pred_region
          %s739 = ssub.s32 16, 16
          %740 = vsyncadd %s732, %s739
          %s741 = smul.addr %s16, 16
          %s742 = scalar_lea.hbm %s2, %s741
          %s744 = sshll.u32 %s734, 4
          %s745 = int_to_ptr.vmem [resolvable:$true] %s744
          %747 = dma.vmem_to_hbm [thread:$0]  %s745, 16, %s742, %s732
        $region32: #{tpu_custom_call.1} parent=27 // pred_fallthru
          _
      $region28: #{tpu_custom_call.1} parent=5 // pred_fallthru
        _
      %p748 = scmp.le.s32.totalorder 2, %s11
      // Predicated region
      $region33: #{tpu_custom_call.1} parent=5 // pred_check
        %p749 = pneg %p748
      $region34: #{tpu_custom_call.1} parent=5 // pred_check_branch
        %751 = sbr.rel (%p749) target = $region36
      $region35: #{tpu_custom_call.1} parent=5 // pred_region
        %s752 = ssub.s32 %s11, 2
        // Predicated region
        $region37: #{tpu_custom_call.1} parent=35 // pred_check
          %p753 = pneg %p87
        $region38: #{tpu_custom_call.1} parent=35 // pred_check_branch
          %755 = sbr.rel (%p753) target = $region40
        $region39: #{tpu_custom_call.1} parent=35 // pred_region
          %s756 = sand.u32 %s72, 1
          %s757 = scalar_lea.sflag [#allocation3], %s756
          %s758 = sand.u32 %s72, 1
          %s759 = scalar_lea.vmem [#allocation2], %s758
          %760 = dma.done %s757, 16
        $region40: #{tpu_custom_call.1} parent=35 // pred_fallthru
          _
      $region36: #{tpu_custom_call.1} parent=5 // pred_fallthru
        _
    $region6: #{tpu_custom_call.1} parent=1 // loop_footer
      %s15 = sadd.s32 1, %s11
    $region7: #{tpu_custom_call.1} parent=1 // loop_footer_branch
      %10 = sbr.rel target = $region3
    $region8: #{tpu_custom_call.1} parent=1 // loop_exit
      _
    %761 = vsyncpa [#allocation3], 1
    %s762 = scalar_lea.sflag [#allocation3], 1
    %763 = vsyncpa %s762, 1

</llo_original>
